<compile_context>
chip_gen: v7x
topology: tpu7x:2x2x1
jax: 0.10.0
libtpu: 0.0.40
codegen_flags: <defaults>
</compile_context>

<pallas_src>
import jax
import jax.numpy as jnp
from jax.experimental import pallas as pl
from jax.experimental.pallas import tpu as pltpu

IN_F = 35
HID_F = 80
OUT_F = 2
HID_PAD = 128  # hidden dim zero-padded to a full lane width (free, one-time)


def _round_up(n, m):
    return (n + m - 1) // m * m


def mlpnet_kernel(x_ref, w1_ref, b1_ref, w2_ref, b2_ref, o_ref):
    # ---- fc1 + relu (f32 on the MXU, f32 accumulate) ----
    h = jnp.dot(x_ref[...], w1_ref[...], preferred_element_type=jnp.float32)
    h = jnp.maximum(h + b1_ref[...], 0.0)          # (TB, 128) f32; padded cols stay 0

    # ---- dropout(0.5): identity in eval/inference mode ----
    # TODO(synk): training-mode dropout (pltpu.prng_random_bits mask * 2.0) not wired in.

    # ---- fc2 ----
    logits = jnp.dot(h, w2_ref[...], preferred_element_type=jnp.float32)
    logits = logits + b2_ref[...]                  # (TB, 2)

    # ---- softmax over dim=1 (exactly the 2 real classes) ----
    m = jnp.max(logits, axis=-1, keepdims=True)
    e = jnp.exp(logits - m)
    s = jnp.sum(e, axis=-1, keepdims=True)
    o_ref[...] = (e / s).astype(o_ref.dtype)


def mlpnet_forward(x, w1, b1, w2, b2, *, tb=1024):
    """Eval-mode MLPNet forward: softmax(fc2(relu(fc1(x))), dim=1)."""
    B = x.shape[0]
    tb = _round_up(min(tb, max(B, 8)), 8)
    b_pad = _round_up(B, tb)

    # One-time (off hot path) weight prep: zero-pad hidden dim to a lane width.
    # Padded hidden columns: w1/b1 zero -> relu(0) == 0; w2 rows zero -> no effect.
    w1p = jnp.zeros((IN_F, HID_PAD), jnp.float32).at[:, :HID_F].set(
        w1.astype(jnp.float32))
    b1p = jnp.zeros((1, HID_PAD), jnp.float32).at[:, :HID_F].set(
        b1.reshape(1, HID_F).astype(jnp.float32))
    w2p = jnp.zeros((HID_PAD, OUT_F), jnp.float32).at[:HID_F, :].set(
        w2.astype(jnp.float32))
    b2p = b2.reshape(1, OUT_F).astype(jnp.float32)

    xp = x.astype(jnp.float32)
    if b_pad != B:
        xp = jnp.pad(xp, ((0, b_pad - B), (0, 0)))

    out = pl.pallas_call(
        mlpnet_kernel,
        out_shape=jax.ShapeDtypeStruct((b_pad, OUT_F), jnp.float32),
        grid_spec=pltpu.PrefetchScalarGridSpec(
            num_scalar_prefetch=0,
            grid=(b_pad // tb,),
            in_specs=[
                pl.BlockSpec((tb, IN_F), lambda i: (i, 0)),          # streamed
                pl.BlockSpec((IN_F, HID_PAD), lambda i: (0, 0)),     # resident
                pl.BlockSpec((1, HID_PAD), lambda i: (0, 0)),        # resident
                pl.BlockSpec((HID_PAD, OUT_F), lambda i: (0, 0)),    # resident
                pl.BlockSpec((1, OUT_F), lambda i: (0, 0)),          # resident
            ],
            out_specs=pl.BlockSpec((tb, OUT_F), lambda i: (i, 0)),
        ),
        compiler_params=pltpu.CompilerParams(
            # batch tiles are independent -> shard across TCs on v7x
            dimension_semantics=("parallel",)),
    )(xp, w1p, b1p, w2p, b2p)

    return out[:B]


def init_params(key):
    # Deterministic init mimicking PyTorch's default Linear init:
    # U(-1/sqrt(fan_in), 1/sqrt(fan_in)).
    k1, k2, k3, k4 = jax.random.split(key, 4)
    lim1 = 1.0 / jnp.sqrt(jnp.float32(IN_F))
    lim2 = 1.0 / jnp.sqrt(jnp.float32(HID_F))
    w1 = jax.random.uniform(k1, (IN_F, HID_F), jnp.float32, -lim1, lim1)
    b1 = jax.random.uniform(k2, (1, HID_F), jnp.float32, -lim1, lim1)
    w2 = jax.random.uniform(k3, (HID_F, OUT_F), jnp.float32, -lim2, lim2)
    b2 = jax.random.uniform(k4, (1, OUT_F), jnp.float32, -lim2, lim2)
    return w1, b1, w2, b2


def reference_forward(x, w1, b1, w2, b2):
    h = jnp.maximum(x @ w1 + b1, 0.0)
    logits = h @ w2 + b2
    return jax.nn.softmax(logits, axis=1)


if __name__ == "__main__":
    key = jax.random.PRNGKey(0)
    pkey, xkey = jax.random.split(key)
    w1, b1, w2, b2 = init_params(pkey)

    B = 256
    x = jax.random.normal(xkey, (B, IN_F), jnp.float32)

    # tb=128 exercises a multi-step batch-tiled grid at this small test batch;
    # production default (tb=1024) kicks in for large B.
    out = mlpnet_forward(x, w1, b1, w2, b2, tb=128)
    out = jax.block_until_ready(out)

    ref = reference_forward(x, w1, b1, w2, b2)
    assert out.shape == (B, OUT_F)
    # f32 everywhere; residual diff is only MXU-pass rounding vs XLA's matmul.
    assert jnp.allclose(out, ref, atol=2e-3, rtol=2e-3), "mismatch vs reference"
    # softmax rows sum to 1 (exact division in the kernel)
    assert jnp.allclose(jnp.sum(out, axis=1), 1.0, atol=1e-5)

    print("KERNEL_OK")
</pallas_src>

<mosaic_0001>
module attributes {stable_mosaic.version = 11 : i64} {
  func.func @mlpnet_kernel(%arg0: i32, %arg1: memref<128x35xf32, #tpu.memory_space<vmem>>, %arg2: memref<35x128xf32, #tpu.memory_space<vmem>>, %arg3: memref<1x128xf32, #tpu.memory_space<vmem>>, %arg4: memref<128x2xf32, #tpu.memory_space<vmem>>, %arg5: memref<1x2xf32, #tpu.memory_space<vmem>>, %arg6: memref<128x2xf32, #tpu.memory_space<vmem>>) attributes {dimension_semantics = [#tpu.dimension_semantics<parallel>], iteration_bounds = array<i64: 2>, scalar_prefetch = 0 : i64, scratch_operands = 0 : i64, tpu.core_type = #tpu.core_type<tc>, window_params = [{transform_indices = @transform_0, window_bounds = array<i64: 128, 35>}, {pipeline_mode = #tpu.pipeline_mode<synchronous>, transform_indices = @transform_1, window_bounds = array<i64: 35, 128>}, {pipeline_mode = #tpu.pipeline_mode<synchronous>, transform_indices = @transform_2, window_bounds = array<i64: 1, 128>}, {pipeline_mode = #tpu.pipeline_mode<synchronous>, transform_indices = @transform_3, window_bounds = array<i64: 128, 2>}, {pipeline_mode = #tpu.pipeline_mode<synchronous>, transform_indices = @transform_4, window_bounds = array<i64: 1, 2>}, {transform_indices = @transform_5, window_bounds = array<i64: 128, 2>}]} {
    %c0 = arith.constant 0 : index
    %c0_0 = arith.constant 0 : index
    %0 = vector.load %arg1[%c0, %c0_0] : memref<128x35xf32, #tpu.memory_space<vmem>>, vector<128x35xf32>
    %c0_1 = arith.constant 0 : index
    %c0_2 = arith.constant 0 : index
    %1 = vector.load %arg2[%c0_1, %c0_2] : memref<35x128xf32, #tpu.memory_space<vmem>>, vector<35x128xf32>
    %cst = arith.constant dense<0.000000e+00> : vector<128x128xf32>
    %2 = tpu.matmul %0, %1, %cst {dimension_numbers = #tpu.dot_dimension_numbers<[1], [0], [0], [1], [0, 0, 1, 1], [], []>} : vector<128x35xf32>, vector<35x128xf32>, vector<128x128xf32> -> vector<128x128xf32>
    %c0_3 = arith.constant 0 : index
    %c0_4 = arith.constant 0 : index
    %3 = vector.load %arg3[%c0_3, %c0_4] : memref<1x128xf32, #tpu.memory_space<vmem>>, vector<1x128xf32>
    %4 = vector.broadcast %3 : vector<1x128xf32> to vector<128x128xf32>
    %5 = arith.addf %2, %4 : vector<128x128xf32>
    %cst_5 = arith.constant 0.000000e+00 : f32
    %6 = vector.broadcast %cst_5 : f32 to vector<128x128xf32>
    %7 = arith.maximumf %5, %6 : vector<128x128xf32>
    %c0_6 = arith.constant 0 : index
    %c0_7 = arith.constant 0 : index
    %8 = vector.load %arg4[%c0_6, %c0_7] : memref<128x2xf32, #tpu.memory_space<vmem>>, vector<128x2xf32>
    %cst_8 = arith.constant dense<0.000000e+00> : vector<128x2xf32>
    %9 = tpu.matmul %7, %8, %cst_8 {dimension_numbers = #tpu.dot_dimension_numbers<[1], [0], [0], [1], [0, 0, 1, 1], [], []>} : vector<128x128xf32>, vector<128x2xf32>, vector<128x2xf32> -> vector<128x2xf32>
    %c0_9 = arith.constant 0 : index
    %c0_10 = arith.constant 0 : index
    %10 = vector.load %arg5[%c0_9, %c0_10] : memref<1x2xf32, #tpu.memory_space<vmem>>, vector<1x2xf32>
    %11 = vector.broadcast %10 : vector<1x2xf32> to vector<128x2xf32>
    %12 = arith.addf %9, %11 : vector<128x2xf32>
    %cst_11 = arith.constant dense<0xFF800000> : vector<128xf32>
    %13 = vector.multi_reduction <maximumf>, %12, %cst_11 [1] : vector<128x2xf32> to vector<128xf32>
    %14 = vector.shape_cast %13 : vector<128xf32> to vector<128x1xf32>
    %15 = vector.broadcast %14 : vector<128x1xf32> to vector<128x2xf32>
    %16 = arith.subf %12, %15 : vector<128x2xf32>
    %17 = math.exp %16 : vector<128x2xf32>
    %cst_12 = arith.constant dense<0.000000e+00> : vector<128xf32>
    %18 = vector.multi_reduction <add>, %17, %cst_12 [1] : vector<128x2xf32> to vector<128xf32>
    %19 = vector.shape_cast %18 : vector<128xf32> to vector<128x1xf32>
    %20 = vector.broadcast %19 : vector<128x1xf32> to vector<128x2xf32>
    %21 = arith.divf %17, %20 : vector<128x2xf32>
    %c0_13 = arith.constant 0 : index
    %c0_14 = arith.constant 0 : index
    %22 = vector.load %arg6[%c0_13, %c0_14] : memref<128x2xf32, #tpu.memory_space<vmem>>, vector<128x2xf32>
    tpu.vector_store %arg6[%c0_13, %c0_14], %21 {strides = array<i32>} : memref<128x2xf32, #tpu.memory_space<vmem>>, vector<128x2xf32>,
    return
  }
  func.func @transform_0(%arg0: i32) -> (i32, i32) {
    %c0_i32 = arith.constant 0 : i32
    %c0_i32_0 = arith.constant 0 : i32
    return %arg0, %c0_i32 : i32, i32
  }
  func.func @transform_1(%arg0: i32) -> (i32, i32) {
    %c0_i32 = arith.constant 0 : i32
    %c0_i32_0 = arith.constant 0 : i32
    %c0_i32_1 = arith.constant 0 : i32
    return %c0_i32, %c0_i32_0 : i32, i32
  }
  func.func @transform_2(%arg0: i32) -> (i32, i32) {
    %c0_i32 = arith.constant 0 : i32
    %c0_i32_0 = arith.constant 0 : i32
    %c0_i32_1 = arith.constant 0 : i32
    return %c0_i32, %c0_i32_0 : i32, i32
  }
  func.func @transform_3(%arg0: i32) -> (i32, i32) {
    %c0_i32 = arith.constant 0 : i32
    %c0_i32_0 = arith.constant 0 : i32
    %c0_i32_1 = arith.constant 0 : i32
    return %c0_i32, %c0_i32_0 : i32, i32
  }
  func.func @transform_4(%arg0: i32) -> (i32, i32) {
    %c0_i32 = arith.constant 0 : i32
    %c0_i32_0 = arith.constant 0 : i32
    %c0_i32_1 = arith.constant 0 : i32
    return %c0_i32, %c0_i32_0 : i32, i32
  }
  func.func @transform_5(%arg0: i32) -> (i32, i32) {
    %c0_i32 = arith.constant 0 : i32
    %c0_i32_0 = arith.constant 0 : i32
    return %arg0, %c0_i32 : i32, i32
  }
}

</mosaic_0001>

<llo_original>
// kernel: tpu_custom_call.1
$region0: #{tpu_custom_call.1}
  #allocation0 [shape = 'u32[]', space=smem, size = 0x4, offset = 0x4, fixed_abs, tag = 'smem constant byte address 0x4 - core index']
  #allocation1 [shape = 'u32[144,128]{1,0:T(1,128)}', space=vmem, size = 0x12000, scoped, tag = 'internal scratch']
  %s0 = inlined_call_operand.vmem [shape: f32[256,35], index: 0, kind: input, shape index: {}]
  %s1 = inlined_call_operand.vmem [shape: f32[35,128], index: 1, kind: input, shape index: {}]
  %s2 = inlined_call_operand.vmem [shape: f32[1,128], index: 2, kind: input, shape index: {}]
  %s3 = inlined_call_operand.vmem [shape: f32[128,2], index: 3, kind: input, shape index: {}]
  %s4 = inlined_call_operand.vmem [shape: f32[1,2], index: 4, kind: input, shape index: {}]
  %s5 = inlined_call_operand.vmem [shape: f32[256,2], index: 5, kind: output, shape index: {}]
  %s6 = sld [smem:[#allocation0]]
  $region53: #{tpu_custom_call.1} parent=0
    _
  %s8 = ssub.s32 1, %s6
  %s9 = scalar_select 0, %s8, %s6
  loop: start=0, step=1, limit=4
  $region2: #{tpu_custom_call.1} parent=0 // loop_pre_header
    _
  $region3: #{tpu_custom_call.1} parent=0 // loop_header
    %s11 = sphi 0, %s15
    %p12 = scmp.ge.s32.totalorder %s11, 4
    %s21 = sphi 0, %s23
    %s24 = sphi 0, %s21
    %s25 = sphi 0, %s24
    %s41 = sphi 0, %s25
    %s45 = sphi 0, %s45
    %s47 = sphi 0, %s45
    %s48 = sphi 0, %s47
    %s62 = sphi 0, %s48
    %s66 = sphi 0, %s66
    %s68 = sphi 0, %s66
    %s69 = sphi 0, %s68
    %s83 = sphi 0, %s69
    %s87 = sphi 0, %s87
    %s89 = sphi 0, %s87
    %s90 = sphi 0, %s89
    %s104 = sphi 0, %s90
    %s108 = sphi 0, %s108
    %s110 = sphi 0, %s108
    %s111 = sphi 0, %s110
    %s125 = sphi 0, %s111
    %s131 = sphi 0, %s133
    %s134 = sphi 0, %s131
    %s135 = sphi 0, %s134
    %s151 = sphi 0, %s135
  $region4: #{tpu_custom_call.1} parent=0 // loop_header_branch
    %14 = sbr.rel (%p12) target = $region8
  $region5: #{tpu_custom_call.1} parent=0 // loop_body
    %s16 = ssub.s32 %s11, 1
    %s17 = ssub.s32 %s11, 2
    %s18 = sadd.s32 %s11, 1
    %s19 = ssub.s32 %s11, %s18
    %p20 = scmp.eq.s32.totalorder %s19, 0
    %s22 = sadd.s32 %s21, 1
    %s23 = scalar_select %p20, %s21, %s22
    %p26 = pneg %p20
    %p27 = scmp.eq.s32.totalorder %s11, 1
    %p28 = por %p26, %p27
    %p29 = scmp.ne.s32.totalorder %s21, %s24
    %p30 = scmp.eq.s32.totalorder %s11, 0
    %p31 = por %p29, %p30
    %p32 = scmp.ne.s32.totalorder %s21, %s24
    %p33 = scmp.eq.s32.totalorder %s16, 1
    %p34 = por %p32, %p33
    %p35 = scmp.ne.s32.totalorder %s24, %s25
    %p36 = scmp.eq.s32.totalorder %s16, 0
    %p37 = por %p35, %p36
    %p38 = scmp.ne.s32.totalorder %s24, %s25
    %p39 = scmp.eq.s32.totalorder %s17, 1
    %p40 = por %p38, %p39
    %p42 = scmp.ne.s32.totalorder %s25, %s41
    %p43 = scmp.eq.s32.totalorder %s17, 0
    %p44 = por %p42, %p43
    %s46 = sadd.s32 %s45, 1
    %p49 = scmp.eq.s32.totalorder %s11, 1
    %p50 = scmp.ne.s32.totalorder %s45, %s47
    %p51 = scmp.eq.s32.totalorder %s11, 0
    %p52 = por %p50, %p51
    %p53 = scmp.ne.s32.totalorder %s45, %s47
    %p54 = scmp.eq.s32.totalorder %s16, 1
    %p55 = por %p53, %p54
    %p56 = scmp.ne.s32.totalorder %s47, %s48
    %p57 = scmp.eq.s32.totalorder %s16, 0
    %p58 = por %p56, %p57
    %p59 = scmp.ne.s32.totalorder %s47, %s48
    %p60 = scmp.eq.s32.totalorder %s17, 1
    %p61 = por %p59, %p60
    %p63 = scmp.ne.s32.totalorder %s48, %s62
    %p64 = scmp.eq.s32.totalorder %s17, 0
    %p65 = por %p63, %p64
    %s67 = sadd.s32 %s66, 1
    %p70 = scmp.eq.s32.totalorder %s11, 1
    %p71 = scmp.ne.s32.totalorder %s66, %s68
    %p72 = scmp.eq.s32.totalorder %s11, 0
    %p73 = por %p71, %p72
    %p74 = scmp.ne.s32.totalorder %s66, %s68
    %p75 = scmp.eq.s32.totalorder %s16, 1
    %p76 = por %p74, %p75
    %p77 = scmp.ne.s32.totalorder %s68, %s69
    %p78 = scmp.eq.s32.totalorder %s16, 0
    %p79 = por %p77, %p78
    %p80 = scmp.ne.s32.totalorder %s68, %s69
    %p81 = scmp.eq.s32.totalorder %s17, 1
    %p82 = por %p80, %p81
    %p84 = scmp.ne.s32.totalorder %s69, %s83
    %p85 = scmp.eq.s32.totalorder %s17, 0
    %p86 = por %p84, %p85
    %s88 = sadd.s32 %s87, 1
    %p91 = scmp.eq.s32.totalorder %s11, 1
    %p92 = scmp.ne.s32.totalorder %s87, %s89
    %p93 = scmp.eq.s32.totalorder %s11, 0
    %p94 = por %p92, %p93
    %p95 = scmp.ne.s32.totalorder %s87, %s89
    %p96 = scmp.eq.s32.totalorder %s16, 1
    %p97 = por %p95, %p96
    %p98 = scmp.ne.s32.totalorder %s89, %s90
    %p99 = scmp.eq.s32.totalorder %s16, 0
    %p100 = por %p98, %p99
    %p101 = scmp.ne.s32.totalorder %s89, %s90
    %p102 = scmp.eq.s32.totalorder %s17, 1
    %p103 = por %p101, %p102
    %p105 = scmp.ne.s32.totalorder %s90, %s104
    %p106 = scmp.eq.s32.totalorder %s17, 0
    %p107 = por %p105, %p106
    %s109 = sadd.s32 %s108, 1
    %p112 = scmp.eq.s32.totalorder %s11, 1
    %p113 = scmp.ne.s32.totalorder %s108, %s110
    %p114 = scmp.eq.s32.totalorder %s11, 0
    %p115 = por %p113, %p114
    %p116 = scmp.ne.s32.totalorder %s108, %s110
    %p117 = scmp.eq.s32.totalorder %s16, 1
    %p118 = por %p116, %p117
    %p119 = scmp.ne.s32.totalorder %s110, %s111
    %p120 = scmp.eq.s32.totalorder %s16, 0
    %p121 = por %p119, %p120
    %p122 = scmp.ne.s32.totalorder %s110, %s111
    %p123 = scmp.eq.s32.totalorder %s17, 1
    %p124 = por %p122, %p123
    %p126 = scmp.ne.s32.totalorder %s111, %s125
    %p127 = scmp.eq.s32.totalorder %s17, 0
    %p128 = por %p126, %p127
    %s129 = ssub.s32 %s11, %s18
    %p130 = scmp.eq.s32.totalorder %s129, 0
    %s132 = sadd.s32 %s131, 1
    %s133 = scalar_select %p130, %s131, %s132
    %p136 = pneg %p130
    %p137 = scmp.eq.s32.totalorder %s11, 1
    %p138 = por %p136, %p137
    %p139 = scmp.ne.s32.totalorder %s131, %s134
    %p140 = scmp.eq.s32.totalorder %s11, 0
    %p141 = por %p139, %p140
    %p142 = scmp.ne.s32.totalorder %s131, %s134
    %p143 = scmp.eq.s32.totalorder %s16, 1
    %p144 = por %p142, %p143
    %p145 = scmp.ne.s32.totalorder %s134, %s135
    %p146 = scmp.eq.s32.totalorder %s16, 0
    %p147 = por %p145, %p146
    %p148 = scmp.ne.s32.totalorder %s134, %s135
    %p149 = scmp.eq.s32.totalorder %s17, 1
    %p150 = por %p148, %p149
    %p152 = scmp.ne.s32.totalorder %s135, %s151
    %p153 = scmp.eq.s32.totalorder %s17, 0
    %p154 = por %p152, %p153
    %p155 = scmp.le.s32.totalorder 1, %s11
    %p156 = scmp.lt.s32.totalorder %s11, 3
    %p157 = pnand %p155, %p156
    %p158 = pneg %p157
    // Predicated region
    $region9: #{tpu_custom_call.1} parent=5 // pred_check
      _
    $region10: #{tpu_custom_call.1} parent=5 // pred_check_branch
      %160 = sbr.rel (%p157) target = $region12
    $region11: #{tpu_custom_call.1} parent=5 // pred_region
      %s161 = ssub.s32 %s11, 1
      // Predicated region
      $region13: #{tpu_custom_call.1} parent=11 // pred_check
        %p162 = pneg %p58
      $region14: #{tpu_custom_call.1} parent=11 // pred_check_branch
        %164 = sbr.rel (%p162) target = $region16
      $region15: #{tpu_custom_call.1} parent=11 // pred_region
        _
      $region16: #{tpu_custom_call.1} parent=11 // pred_fallthru
        _
      // Predicated region
      $region17: #{tpu_custom_call.1} parent=11 // pred_check
        %p165 = pneg %p79
      $region18: #{tpu_custom_call.1} parent=11 // pred_check_branch
        %167 = sbr.rel (%p165) target = $region20
      $region19: #{tpu_custom_call.1} parent=11 // pred_region
        _
      $region20: #{tpu_custom_call.1} parent=11 // pred_fallthru
        _
      // Predicated region
      $region21: #{tpu_custom_call.1} parent=11 // pred_check
        %p168 = pneg %p100
      $region22: #{tpu_custom_call.1} parent=11 // pred_check_branch
        %170 = sbr.rel (%p168) target = $region24
      $region23: #{tpu_custom_call.1} parent=11 // pred_region
        _
      $region24: #{tpu_custom_call.1} parent=11 // pred_fallthru
        _
      // Predicated region
      $region25: #{tpu_custom_call.1} parent=11 // pred_check
        %p171 = pneg %p121
      $region26: #{tpu_custom_call.1} parent=11 // pred_check_branch
        %173 = sbr.rel (%p171) target = $region28
      $region27: #{tpu_custom_call.1} parent=11 // pred_region
        _
      $region28: #{tpu_custom_call.1} parent=11 // pred_fallthru
        _
    $region12: #{tpu_custom_call.1} parent=5 // pred_fallthru
      _
    %p174 = scmp.lt.s32.totalorder %s11, 2
    // Predicated region
    $region29: #{tpu_custom_call.1} parent=5 // pred_check
      %p175 = pneg %p174
    $region30: #{tpu_custom_call.1} parent=5 // pred_check_branch
      %177 = sbr.rel (%p175) target = $region32
    $region31: #{tpu_custom_call.1} parent=5 // pred_region
      // Predicated region
      $region33: #{tpu_custom_call.1} parent=31 // pred_check
        %p178 = pneg %p31
      $region34: #{tpu_custom_call.1} parent=31 // pred_check_branch
        %180 = sbr.rel (%p178) target = $region36
      $region35: #{tpu_custom_call.1} parent=31 // pred_region
        %s181 = smul.u32 16, %s11
        %p182 = scmp.lt.s32.totalorder %s181, 31
        %s183 = scalar_select %p182, %s181, 31
        %s184 = smul.addr %s183, 8
        %s185 = scalar_lea.vmem %s0, %s184
        %s186 = smul.u32 16, %s11
      $region36: #{tpu_custom_call.1} parent=31 // pred_fallthru
        _
    $region32: #{tpu_custom_call.1} parent=5 // pred_fallthru
      _
    %p187 = scmp.le.s32.totalorder 1, %s11
    %p188 = scmp.lt.s32.totalorder %s11, 3
    %p189 = pnand %p187, %p188
    %p190 = pneg %p189
    // Predicated region
    $region37: #{tpu_custom_call.1} parent=5 // pred_check
      _
    $region38: #{tpu_custom_call.1} parent=5 // pred_check_branch
      %192 = sbr.rel (%p189) target = $region40
    $region39: #{tpu_custom_call.1} parent=5 // pred_region
      %s193 = ssub.s32 %s11, 1
      %s194 = smul.u32 16, %s16
      %p195 = scmp.lt.s32.totalorder %s194, 31
      %s196 = scalar_select %p195, %s194, 31
      %s197 = smul.addr %s196, 8
      %s198 = scalar_lea.vmem %s0, %s197
      %p199 = pneg %p37
      %p200 = pneg %p34
      %p201 = pneg %p58
      %p202 = pneg %p55
      %p203 = pneg %p79
      %p204 = pneg %p76
      %p205 = pneg %p100
      %p206 = pneg %p97
      %p207 = pneg %p121
      %p208 = pneg %p118
      %p209 = pneg %p147
      %p210 = pneg %p144
      %s211 = smul.u32 16, %s16
      %p212 = scmp.lt.s32.totalorder %s211, 31
      %s213 = scalar_select %p212, %s211, 31
      %s214 = smul.addr %s213, 8
      %s215 = scalar_lea.vmem %s5, %s214
      %s216 = smul.u32 16, %s16
      %p217 = scmp.lt.s32.totalorder %s216, 31
      %s218 = scalar_select %p217, %s216, 31
      %s219 = smul.addr %s218, 8
      %s220 = scalar_lea.vmem %s0, %s219
      %s221 = smul.u32 16, %s16
      %s222 = smul.u32 16, %s16
      %p223 = scmp.lt.s32.totalorder %s222, 31
      %s224 = scalar_select %p223, %s222, 31
      %s225 = smul.addr %s224, 8
      %s226 = scalar_lea.vmem %s5, %s225
      %s227 = smul.u32 16, %s16
      %v228 = vld [vmem:[%s220] sm:$0xff]
      %v229 = vld [vmem:[%s220 + $0x8] sm:$0xff]
      %v230 = vld [vmem:[%s220 + $0x10] sm:$0xff]
      %v231 = vld [vmem:[%s220 + $0x18] sm:$0xff]
      %v232 = vld [vmem:[%s220 + $0x20] sm:$0xff]
      %v233 = vld [vmem:[%s220 + $0x28] sm:$0xff]
      %v234 = vld [vmem:[%s220 + $0x30] sm:$0xff]
      %v235 = vld [vmem:[%s220 + $0x38] sm:$0xff]
      %v236 = vld [vmem:[%s220 + $0x40] sm:$0xff]
      %v237 = vld [vmem:[%s220 + $0x48] sm:$0xff]
      %v238 = vld [vmem:[%s220 + $0x50] sm:$0xff]
      %v239 = vld [vmem:[%s220 + $0x58] sm:$0xff]
      %v240 = vld [vmem:[%s220 + $0x60] sm:$0xff]
      %v241 = vld [vmem:[%s220 + $0x68] sm:$0xff]
      %v242 = vld [vmem:[%s220 + $0x70] sm:$0xff]
      %v243 = vld [vmem:[%s220 + $0x78] sm:$0xff]
      %v244 = vld [vmem:[%s1] sm:$0xff]
      %v245 = vld [vmem:[%s1 + $0x8] sm:$0xff]
      %v246 = vld [vmem:[%s1 + $0x10] sm:$0xff]
      %v247 = vld [vmem:[%s1 + $0x18] sm:$0xff]
      %v248 = vld [vmem:[%s1 + $0x20] sm:$0x7]
      %v249 = vld [vmem:[%s2] sm:$0x1]
      %v251 = vlaneseq
      %v252 = vshrl.u32 %v251, 7
      %v253 = vsub.s32 0, %v252
      %v254 = vrot.slane %v249, %v253
      %vm256 = vcmask 285696
      %v258 = vsel %vm256, %v228, 0
      %v261 = vsel %vm256, %v229, 0
      %v264 = vsel %vm256, %v230, 0
      %v267 = vsel %vm256, %v231, 0
      %v270 = vsel %vm256, %v232, 0
      %v273 = vsel %vm256, %v233, 0
      %v276 = vsel %vm256, %v234, 0
      %v279 = vsel %vm256, %v235, 0
      %v282 = vsel %vm256, %v236, 0
      %v285 = vsel %vm256, %v237, 0
      %v288 = vsel %vm256, %v238, 0
      %v291 = vsel %vm256, %v239, 0
      %v294 = vsel %vm256, %v240, 0
      %v297 = vsel %vm256, %v241, 0
      %v300 = vsel %vm256, %v242, 0
      %v303 = vsel %vm256, %v243, 0
      %vm305 = vcmask 1042432
      %v307 = vsel %vm305, %v248, 0
      %309 = vmatprep.subr.mxu0 0.0
      %310 = vmatpush1.msra.mxu0 %v244
      %311 = vmatprep.subr.mxu0 0.0
      %312 = vmatpush1.msra.mxu0 %v245
      %313 = vmatprep.subr.mxu0 0.0
      %314 = vmatpush1.msra.mxu0 %v246
      %315 = vmatprep.subr.mxu0 0.0
      %316 = vmatpush1.msra.mxu0 %v247
      %317 = vmatprep.subr.mxu0 0.0
      %318 = vmatpush1.msra.mxu0 %v307
      %319 = vmatprep.subr.mxu0 0.0
      %320 = vmatpush1.msra.mxu0 0.0
      %321 = vmatprep.subr.mxu0 0.0
      %322 = vmatpush1.msra.mxu0 0.0
      %323 = vmatprep.subr.mxu0 0.0
      %324 = vmatpush1.msra.mxu0 0.0
      %325 = vmatprep.subr.mxu0 0.0
      %326 = vmatpush1.msra.mxu0 0.0
      %327 = vmatprep.subr.mxu0 0.0
      %328 = vmatpush1.msra.mxu0 0.0
      %329 = vmatprep.subr.mxu0 0.0
      %330 = vmatpush1.msra.mxu0 0.0
      %331 = vmatprep.subr.mxu0 0.0
      %332 = vmatpush1.msra.mxu0 0.0
      %333 = vmatprep.subr.mxu0 0.0
      %334 = vmatpush1.msra.mxu0 0.0
      %335 = vmatprep.subr.mxu0 0.0
      %336 = vmatpush1.msra.mxu0 0.0
      %337 = vmatprep.subr.mxu0 0.0
      %338 = vmatpush1.msra.mxu0 0.0
      %339 = vmatprep.subr.mxu0 0.0
      %340 = vmatpush1.msra.mxu0 0.0
      %341 = vmatprep.subr.mxu0 0.0
      %342 = vmatpush1.msra.mxu0 0.0
      %343 = vmatprep.subr.mxu0 0.0
      %344 = vmatpush1.msra.mxu0 0.0
      %345 = vmatprep.subr.mxu0 0.0
      %346 = vmatpush1.msra.mxu0 0.0
      %347 = vmatprep.subr.mxu0 0.0
      %348 = vmatpush1.msra.mxu0 0.0
      %349 = vmatprep.subr.mxu0 0.0
      %350 = vmatpush1.msra.mxu0 0.0
      %351 = vmatprep.subr.mxu0 0.0
      %352 = vmatpush1.msra.mxu0 0.0
      %353 = vmatprep.subr.mxu0 0.0
      %354 = vmatpush1.msra.mxu0 0.0
      %355 = vmatprep.subr.mxu0 0.0
      %356 = vmatpush1.msra.mxu0 0.0
      %357 = vmatprep.subr.mxu0 0.0
      %358 = vmatpush1.msra.mxu0 0.0
      %359 = vmatprep.subr.mxu0 0.0
      %360 = vmatpush1.msra.mxu0 0.0
      %361 = vmatprep.subr.mxu0 0.0
      %362 = vmatpush1.msra.mxu0 0.0
      %363 = vmatprep.subr.mxu0 0.0
      %364 = vmatpush1.msra.mxu0 0.0
      %365 = vmatprep.subr.mxu0 0.0
      %366 = vmatpush1.msra.mxu0 0.0
      %367 = vmatprep.subr.mxu0 0.0
      %368 = vmatpush1.msra.mxu0 0.0
      %369 = vmatprep.subr.mxu0 0.0
      %370 = vmatpush1.msra.mxu0 0.0
      %371 = vmatprep.subr.mxu0 0.0
      %372 = vmatpush1.msra.mxu0 0.0
      %373 = vmatprep.mubr.f32.mxu0 0.0
      %374 = vmatmul.mubr.f32.gmra.mrb[0].mxu0 %v258
      %v375 = vpop.f32.mrb[0].mxu0
      %v376 = vadd.f32 %v254, %v375
      %v377 = vpop.f32.mrb[0].mxu0
      %378 = vmatprep.mubr.f32.mxu0 0.0
      %379 = vmatmul.mubr.f32.gmra.mrb[0].mxu0 %v261
      %v380 = vpop.f32.mrb[0].mxu0
      %v381 = vadd.f32 %v254, %v380
      %v382 = vpop.f32.mrb[0].mxu0
      %383 = vmatprep.mubr.f32.mxu0 0.0
      %384 = vmatmul.mubr.f32.gmra.mrb[0].mxu0 %v264
      %v385 = vpop.f32.mrb[0].mxu0
      %v386 = vadd.f32 %v254, %v385
      %v387 = vpop.f32.mrb[0].mxu0
      %388 = vmatprep.mubr.f32.mxu0 0.0
      %389 = vmatmul.mubr.f32.gmra.mrb[0].mxu0 %v267
      %v390 = vpop.f32.mrb[0].mxu0
      %v391 = vadd.f32 %v254, %v390
      %v392 = vpop.f32.mrb[0].mxu0
      %393 = vmatprep.mubr.f32.mxu0 0.0
      %394 = vmatmul.mubr.f32.gmra.mrb[0].mxu0 %v270
      %v395 = vpop.f32.mrb[0].mxu0
      %v396 = vadd.f32 %v254, %v395
      %v397 = vpop.f32.mrb[0].mxu0
      %398 = vmatprep.mubr.f32.mxu0 0.0
      %399 = vmatmul.mubr.f32.gmra.mrb[0].mxu0 %v273
      %v400 = vpop.f32.mrb[0].mxu0
      %v401 = vadd.f32 %v254, %v400
      %v402 = vpop.f32.mrb[0].mxu0
      %403 = vmatprep.mubr.f32.mxu0 0.0
      %404 = vmatmul.mubr.f32.gmra.mrb[0].mxu0 %v276
      %v405 = vpop.f32.mrb[0].mxu0
      %v406 = vadd.f32 %v254, %v405
      %v407 = vpop.f32.mrb[0].mxu0
      %408 = vmatprep.mubr.f32.mxu0 0.0
      %409 = vmatmul.mubr.f32.gmra.mrb[0].mxu0 %v279
      %v410 = vpop.f32.mrb[0].mxu0
      %v411 = vadd.f32 %v254, %v410
      %v412 = vpop.f32.mrb[0].mxu0
      %413 = vmatprep.mubr.f32.mxu0 0.0
      %414 = vmatmul.mubr.f32.gmra.mrb[0].mxu0 %v282
      %v415 = vpop.f32.mrb[0].mxu0
      %v416 = vadd.f32 %v254, %v415
      %v417 = vpop.f32.mrb[0].mxu0
      %418 = vmatprep.mubr.f32.mxu0 0.0
      %419 = vmatmul.mubr.f32.gmra.mrb[0].mxu0 %v285
      %v420 = vpop.f32.mrb[0].mxu0
      %v421 = vadd.f32 %v254, %v420
      %v422 = vpop.f32.mrb[0].mxu0
      %423 = vmatprep.mubr.f32.mxu0 0.0
      %424 = vmatmul.mubr.f32.gmra.mrb[0].mxu0 %v288
      %v425 = vpop.f32.mrb[0].mxu0
      %v426 = vadd.f32 %v254, %v425
      %v427 = vpop.f32.mrb[0].mxu0
      %428 = vmatprep.mubr.f32.mxu0 0.0
      %429 = vmatmul.mubr.f32.gmra.mrb[0].mxu0 %v291
      %v430 = vpop.f32.mrb[0].mxu0
      %v431 = vadd.f32 %v254, %v430
      %v432 = vpop.f32.mrb[0].mxu0
      %433 = vmatprep.mubr.f32.mxu0 0.0
      %434 = vmatmul.mubr.f32.gmra.mrb[0].mxu0 %v294
      %v435 = vpop.f32.mrb[0].mxu0
      %v436 = vadd.f32 %v254, %v435
      %v437 = vpop.f32.mrb[0].mxu0
      %438 = vmatprep.mubr.f32.mxu0 0.0
      %439 = vmatmul.mubr.f32.gmra.mrb[0].mxu0 %v297
      %v440 = vpop.f32.mrb[0].mxu0
      %v441 = vadd.f32 %v254, %v440
      %v442 = vpop.f32.mrb[0].mxu0
      %443 = vmatprep.mubr.f32.mxu0 0.0
      %444 = vmatmul.mubr.f32.gmra.mrb[0].mxu0 %v300
      %v445 = vpop.f32.mrb[0].mxu0
      %v446 = vadd.f32 %v254, %v445
      %v447 = vpop.f32.mrb[0].mxu0
      %448 = vmatprep.mubr.f32.mxu0 0.0
      %449 = vmatmul.mubr.f32.gmra.mrb[0].mxu0 %v303
      %v450 = vpop.f32.mrb[0].mxu0
      %v451 = vadd.f32 %v254, %v450
      %v452 = vpop.f32.mrb[0].mxu0
      %453 = vdwg.mxu0
      %v454 = vmax.f32 %v376, 0.0
      %v455 = vmax.f32 %v381, 0.0
      %v456 = vmax.f32 %v386, 0.0
      %v457 = vmax.f32 %v391, 0.0
      %v458 = vmax.f32 %v396, 0.0
      %v459 = vmax.f32 %v401, 0.0
      %v460 = vmax.f32 %v406, 0.0
      %v461 = vmax.f32 %v411, 0.0
      %v462 = vmax.f32 %v416, 0.0
      %v463 = vmax.f32 %v421, 0.0
      %v464 = vmax.f32 %v426, 0.0
      %v465 = vmax.f32 %v431, 0.0
      %v466 = vmax.f32 %v436, 0.0
      %v467 = vmax.f32 %v441, 0.0
      %v468 = vmax.f32 %v446, 0.0
      %v469 = vmax.f32 %v451, 0.0
      %v470 = vld [vmem:[%s3] sm:$0xff]
      %v471 = vld [vmem:[%s3 + $0x8] sm:$0xff]
      %v472 = vld [vmem:[%s3 + $0x10] sm:$0xff]
      %v473 = vld [vmem:[%s3 + $0x18] sm:$0xff]
      %v474 = vld [vmem:[%s3 + $0x20] sm:$0xff]
      %v475 = vld [vmem:[%s3 + $0x28] sm:$0xff]
      %v476 = vld [vmem:[%s3 + $0x30] sm:$0xff]
      %v477 = vld [vmem:[%s3 + $0x38] sm:$0xff]
      %v478 = vld [vmem:[%s3 + $0x40] sm:$0xff]
      %v479 = vld [vmem:[%s3 + $0x48] sm:$0xff]
      %v480 = vld [vmem:[%s3 + $0x50] sm:$0xff]
      %v481 = vld [vmem:[%s3 + $0x58] sm:$0xff]
      %v482 = vld [vmem:[%s3 + $0x60] sm:$0xff]
      %v483 = vld [vmem:[%s3 + $0x68] sm:$0xff]
      %v484 = vld [vmem:[%s3 + $0x70] sm:$0xff]
      %v485 = vld [vmem:[%s3 + $0x78] sm:$0xff]
      %v486 = vld [vmem:[%s4] sm:$0x1]
      %v488 = vlaneseq
      %v489 = vshrl.u32 %v488, 7
      %v490 = vsub.s32 0, %v489
      %v491 = vrot.slane %v486, %v490
      %493 = vmatprep.subr.mxu0 0.0
      %494 = vmatpush1.msra.mxu0 %v470
      %495 = vmatprep.subr.mxu0 0.0
      %496 = vmatpush1.msra.mxu0 %v471
      %497 = vmatprep.subr.mxu0 0.0
      %498 = vmatpush1.msra.mxu0 %v472
      %499 = vmatprep.subr.mxu0 0.0
      %500 = vmatpush1.msra.mxu0 %v473
      %501 = vmatprep.subr.mxu0 0.0
      %502 = vmatpush1.msra.mxu0 %v474
      %503 = vmatprep.subr.mxu0 0.0
      %504 = vmatpush1.msra.mxu0 %v475
      %505 = vmatprep.subr.mxu0 0.0
      %506 = vmatpush1.msra.mxu0 %v476
      %507 = vmatprep.subr.mxu0 0.0
      %508 = vmatpush1.msra.mxu0 %v477
      %509 = vmatprep.subr.mxu0 0.0
      %510 = vmatpush1.msra.mxu0 %v478
      %511 = vmatprep.subr.mxu0 0.0
      %512 = vmatpush1.msra.mxu0 %v479
      %513 = vmatprep.subr.mxu0 0.0
      %514 = vmatpush1.msra.mxu0 %v480
      %515 = vmatprep.subr.mxu0 0.0
      %516 = vmatpush1.msra.mxu0 %v481
      %517 = vmatprep.subr.mxu0 0.0
      %518 = vmatpush1.msra.mxu0 %v482
      %519 = vmatprep.subr.mxu0 0.0
      %520 = vmatpush1.msra.mxu0 %v483
      %521 = vmatprep.subr.mxu0 0.0
      %522 = vmatpush1.msra.mxu0 %v484
      %523 = vmatprep.subr.mxu0 0.0
      %524 = vmatpush1.msra.mxu0 %v485
      %525 = vmatprep.subr.mxu0 0.0
      %526 = vmatpush1.msra.mxu0 0.0
      %527 = vmatprep.subr.mxu0 0.0
      %528 = vmatpush1.msra.mxu0 0.0
      %529 = vmatprep.subr.mxu0 0.0
      %530 = vmatpush1.msra.mxu0 0.0
      %531 = vmatprep.subr.mxu0 0.0
      %532 = vmatpush1.msra.mxu0 0.0
      %533 = vmatprep.subr.mxu0 0.0
      %534 = vmatpush1.msra.mxu0 0.0
      %535 = vmatprep.subr.mxu0 0.0
      %536 = vmatpush1.msra.mxu0 0.0
      %537 = vmatprep.subr.mxu0 0.0
      %538 = vmatpush1.msra.mxu0 0.0
      %539 = vmatprep.subr.mxu0 0.0
      %540 = vmatpush1.msra.mxu0 0.0
      %541 = vmatprep.subr.mxu0 0.0
      %542 = vmatpush1.msra.mxu0 0.0
      %543 = vmatprep.subr.mxu0 0.0
      %544 = vmatpush1.msra.mxu0 0.0
      %545 = vmatprep.subr.mxu0 0.0
      %546 = vmatpush1.msra.mxu0 0.0
      %547 = vmatprep.subr.mxu0 0.0
      %548 = vmatpush1.msra.mxu0 0.0
      %549 = vmatprep.subr.mxu0 0.0
      %550 = vmatpush1.msra.mxu0 0.0
      %551 = vmatprep.subr.mxu0 0.0
      %552 = vmatpush1.msra.mxu0 0.0
      %553 = vmatprep.subr.mxu0 0.0
      %554 = vmatpush1.msra.mxu0 0.0
      %555 = vmatprep.subr.mxu0 0.0
      %556 = vmatpush1.msra.mxu0 0.0
      %557 = vmatprep.mubr.f32.mxu0 0.0
      %558 = vmatmul.mubr.f32.gmra.mrb[0].mxu0 %v454
      %v559 = vpop.f32.mrb[0].mxu0
      %v560 = vadd.f32 %v491, %v559
      %v561 = vpop.f32.mrb[0].mxu0
      %562 = vmatprep.mubr.f32.mxu0 0.0
      %563 = vmatmul.mubr.f32.gmra.mrb[0].mxu0 %v455
      %v564 = vpop.f32.mrb[0].mxu0
      %v565 = vadd.f32 %v491, %v564
      %v566 = vpop.f32.mrb[0].mxu0
      %567 = vmatprep.mubr.f32.mxu0 0.0
      %568 = vmatmul.mubr.f32.gmra.mrb[0].mxu0 %v456
      %v569 = vpop.f32.mrb[0].mxu0
      %v570 = vadd.f32 %v491, %v569
      %v571 = vpop.f32.mrb[0].mxu0
      %572 = vmatprep.mubr.f32.mxu0 0.0
      %573 = vmatmul.mubr.f32.gmra.mrb[0].mxu0 %v457
      %v574 = vpop.f32.mrb[0].mxu0
      %v575 = vadd.f32 %v491, %v574
      %v576 = vpop.f32.mrb[0].mxu0
      %577 = vmatprep.mubr.f32.mxu0 0.0
      %578 = vmatmul.mubr.f32.gmra.mrb[0].mxu0 %v458
      %v579 = vpop.f32.mrb[0].mxu0
      %v580 = vadd.f32 %v491, %v579
      %v581 = vpop.f32.mrb[0].mxu0
      %582 = vmatprep.mubr.f32.mxu0 0.0
      %583 = vmatmul.mubr.f32.gmra.mrb[0].mxu0 %v459
      %v584 = vpop.f32.mrb[0].mxu0
      %v585 = vadd.f32 %v491, %v584
      %v586 = vpop.f32.mrb[0].mxu0
      %587 = vmatprep.mubr.f32.mxu0 0.0
      %588 = vmatmul.mubr.f32.gmra.mrb[0].mxu0 %v460
      %v589 = vpop.f32.mrb[0].mxu0
      %v590 = vadd.f32 %v491, %v589
      %v591 = vpop.f32.mrb[0].mxu0
      %592 = vmatprep.mubr.f32.mxu0 0.0
      %593 = vmatmul.mubr.f32.gmra.mrb[0].mxu0 %v461
      %v594 = vpop.f32.mrb[0].mxu0
      %v595 = vadd.f32 %v491, %v594
      %v596 = vpop.f32.mrb[0].mxu0
      %597 = vmatprep.mubr.f32.mxu0 0.0
      %598 = vmatmul.mubr.f32.gmra.mrb[0].mxu0 %v462
      %v599 = vpop.f32.mrb[0].mxu0
      %v600 = vadd.f32 %v491, %v599
      %v601 = vpop.f32.mrb[0].mxu0
      %602 = vmatprep.mubr.f32.mxu0 0.0
      %603 = vmatmul.mubr.f32.gmra.mrb[0].mxu0 %v463
      %v604 = vpop.f32.mrb[0].mxu0
      %v605 = vadd.f32 %v491, %v604
      %v606 = vpop.f32.mrb[0].mxu0
      %607 = vmatprep.mubr.f32.mxu0 0.0
      %608 = vmatmul.mubr.f32.gmra.mrb[0].mxu0 %v464
      %v609 = vpop.f32.mrb[0].mxu0
      %v610 = vadd.f32 %v491, %v609
      %v611 = vpop.f32.mrb[0].mxu0
      %612 = vmatprep.mubr.f32.mxu0 0.0
      %613 = vmatmul.mubr.f32.gmra.mrb[0].mxu0 %v465
      %v614 = vpop.f32.mrb[0].mxu0
      %v615 = vadd.f32 %v491, %v614
      %v616 = vpop.f32.mrb[0].mxu0
      %617 = vmatprep.mubr.f32.mxu0 0.0
      %618 = vmatmul.mubr.f32.gmra.mrb[0].mxu0 %v466
      %v619 = vpop.f32.mrb[0].mxu0
      %v620 = vadd.f32 %v491, %v619
      %v621 = vpop.f32.mrb[0].mxu0
      %622 = vmatprep.mubr.f32.mxu0 0.0
      %623 = vmatmul.mubr.f32.gmra.mrb[0].mxu0 %v467
      %v624 = vpop.f32.mrb[0].mxu0
      %v625 = vadd.f32 %v491, %v624
      %v626 = vpop.f32.mrb[0].mxu0
      %627 = vmatprep.mubr.f32.mxu0 0.0
      %628 = vmatmul.mubr.f32.gmra.mrb[0].mxu0 %v468
      %v629 = vpop.f32.mrb[0].mxu0
      %v630 = vadd.f32 %v491, %v629
      %v631 = vpop.f32.mrb[0].mxu0
      %632 = vmatprep.mubr.f32.mxu0 0.0
      %633 = vmatmul.mubr.f32.gmra.mrb[0].mxu0 %v469
      %v634 = vpop.f32.mrb[0].mxu0
      %v635 = vadd.f32 %v491, %v634
      %v636 = vpop.f32.mrb[0].mxu0
      %637 = vdwg.mxu0
      %vm638 = vcmask 15360
      %v639 = vsel %vm638, %v560, -inf
      %640 = vmax.xlane.f32.xlu0 %v639
      %v641 = vpop.xlane.xlu0 %640
      %v642 = vsel %vm638, %v565, -inf
      %643 = vmax.xlane.f32.xlu0 %v642
      %v644 = vpop.xlane.xlu0 %643
      %v645 = vsel %vm638, %v570, -inf
      %646 = vmax.xlane.f32.xlu0 %v645
      %v647 = vpop.xlane.xlu0 %646
      %v648 = vsel %vm638, %v575, -inf
      %649 = vmax.xlane.f32.xlu0 %v648
      %v650 = vpop.xlane.xlu0 %649
      %v651 = vsel %vm638, %v580, -inf
      %652 = vmax.xlane.f32.xlu0 %v651
      %v653 = vpop.xlane.xlu0 %652
      %v654 = vsel %vm638, %v585, -inf
      %655 = vmax.xlane.f32.xlu0 %v654
      %v656 = vpop.xlane.xlu0 %655
      %v657 = vsel %vm638, %v590, -inf
      %658 = vmax.xlane.f32.xlu0 %v657
      %v659 = vpop.xlane.xlu0 %658
      %v660 = vsel %vm638, %v595, -inf
      %661 = vmax.xlane.f32.xlu0 %v660
      %v662 = vpop.xlane.xlu0 %661
      %v663 = vsel %vm638, %v600, -inf
      %664 = vmax.xlane.f32.xlu0 %v663
      %v665 = vpop.xlane.xlu0 %664
      %v666 = vsel %vm638, %v605, -inf
      %667 = vmax.xlane.f32.xlu0 %v666
      %v668 = vpop.xlane.xlu0 %667
      %v669 = vsel %vm638, %v610, -inf
      %670 = vmax.xlane.f32.xlu0 %v669
      %v671 = vpop.xlane.xlu0 %670
      %v672 = vsel %vm638, %v615, -inf
      %673 = vmax.xlane.f32.xlu0 %v672
      %v674 = vpop.xlane.xlu0 %673
      %v675 = vsel %vm638, %v620, -inf
      %676 = vmax.xlane.f32.xlu0 %v675
      %v677 = vpop.xlane.xlu0 %676
      %v678 = vsel %vm638, %v625, -inf
      %679 = vmax.xlane.f32.xlu0 %v678
      %v680 = vpop.xlane.xlu0 %679
      %v681 = vsel %vm638, %v630, -inf
      %682 = vmax.xlane.f32.xlu0 %v681
      %v683 = vpop.xlane.xlu0 %682
      %v684 = vsel %vm638, %v635, -inf
      %685 = vmax.xlane.f32.xlu0 %v684
      %v686 = vpop.xlane.xlu0 %685
      %v687 = vsub.f32 %v560, %v641
      %v688 = vsub.f32 %v565, %v644
      %v689 = vsub.f32 %v570, %v647
      %v690 = vsub.f32 %v575, %v650
      %v691 = vsub.f32 %v580, %v653
      %v692 = vsub.f32 %v585, %v656
      %v693 = vsub.f32 %v590, %v659
      %v694 = vsub.f32 %v595, %v662
      %v695 = vsub.f32 %v600, %v665
      %v696 = vsub.f32 %v605, %v668
      %v697 = vsub.f32 %v610, %v671
      %v698 = vsub.f32 %v615, %v674
      %v699 = vsub.f32 %v620, %v677
      %v700 = vsub.f32 %v625, %v680
      %v701 = vsub.f32 %v630, %v683
      %v702 = vsub.f32 %v635, %v686
      %v703 = vmul.f32 %v687, 1.442695
      %v704 = vpow.pop %v703
      %v705 = vmul.f32 %v688, 1.442695
      %v706 = vpow.pop %v705
      %v707 = vmul.f32 %v689, 1.442695
      %v708 = vpow.pop %v707
      %v709 = vmul.f32 %v690, 1.442695
      %v710 = vpow.pop %v709
      %v711 = vmul.f32 %v691, 1.442695
      %v712 = vpow.pop %v711
      %v713 = vmul.f32 %v692, 1.442695
      %v714 = vpow.pop %v713
      %v715 = vmul.f32 %v693, 1.442695
      %v716 = vpow.pop %v715
      %v717 = vmul.f32 %v694, 1.442695
      %v718 = vpow.pop %v717
      %v719 = vmul.f32 %v695, 1.442695
      %v720 = vpow.pop %v719
      %v721 = vmul.f32 %v696, 1.442695
      %v722 = vpow.pop %v721
      %v723 = vmul.f32 %v697, 1.442695
      %v724 = vpow.pop %v723
      %v725 = vmul.f32 %v698, 1.442695
      %v726 = vpow.pop %v725
      %v727 = vmul.f32 %v699, 1.442695
      %v728 = vpow.pop %v727
      %v729 = vmul.f32 %v700, 1.442695
      %v730 = vpow.pop %v729
      %v731 = vmul.f32 %v701, 1.442695
      %v732 = vpow.pop %v731
      %v733 = vmul.f32 %v702, 1.442695
      %v734 = vpow.pop %v733
      %v735 = vsel %vm638, %v704, 0.0
      %736 = vadd.xlane.f32.xlu0 %v735
      %v737 = vpop.xlane.xlu0 %736
      %v738 = vsel %vm638, %v706, 0.0
      %739 = vadd.xlane.f32.xlu0 %v738
      %v740 = vpop.xlane.xlu0 %739
      %v741 = vsel %vm638, %v708, 0.0
      %742 = vadd.xlane.f32.xlu0 %v741
      %v743 = vpop.xlane.xlu0 %742
      %v744 = vsel %vm638, %v710, 0.0
      %745 = vadd.xlane.f32.xlu0 %v744
      %v746 = vpop.xlane.xlu0 %745
      %v747 = vsel %vm638, %v712, 0.0
      %748 = vadd.xlane.f32.xlu0 %v747
      %v749 = vpop.xlane.xlu0 %748
      %v750 = vsel %vm638, %v714, 0.0
      %751 = vadd.xlane.f32.xlu0 %v750
      %v752 = vpop.xlane.xlu0 %751
      %v753 = vsel %vm638, %v716, 0.0
      %754 = vadd.xlane.f32.xlu0 %v753
      %v755 = vpop.xlane.xlu0 %754
      %v756 = vsel %vm638, %v718, 0.0
      %757 = vadd.xlane.f32.xlu0 %v756
      %v758 = vpop.xlane.xlu0 %757
      %v759 = vsel %vm638, %v720, 0.0
      %760 = vadd.xlane.f32.xlu0 %v759
      %v761 = vpop.xlane.xlu0 %760
      %v762 = vsel %vm638, %v722, 0.0
      %763 = vadd.xlane.f32.xlu0 %v762
      %v764 = vpop.xlane.xlu0 %763
      %v765 = vsel %vm638, %v724, 0.0
      %766 = vadd.xlane.f32.xlu0 %v765
      %v767 = vpop.xlane.xlu0 %766
      %v768 = vsel %vm638, %v726, 0.0
      %769 = vadd.xlane.f32.xlu0 %v768
      %v770 = vpop.xlane.xlu0 %769
      %v771 = vsel %vm638, %v728, 0.0
      %772 = vadd.xlane.f32.xlu0 %v771
      %v773 = vpop.xlane.xlu0 %772
      %v774 = vsel %vm638, %v730, 0.0
      %775 = vadd.xlane.f32.xlu0 %v774
      %v776 = vpop.xlane.xlu0 %775
      %v777 = vsel %vm638, %v732, 0.0
      %778 = vadd.xlane.f32.xlu0 %v777
      %v779 = vpop.xlane.xlu0 %778
      %v780 = vsel %vm638, %v734, 0.0
      %781 = vadd.xlane.f32.xlu0 %v780
      %v782 = vpop.xlane.xlu0 %781
      %v783 = vrcp.pop %v737
      %v784 = vmul.f32 %v704, %v783
      %v785 = vrcp.pop %v740
      %v786 = vmul.f32 %v706, %v785
      %v787 = vrcp.pop %v743
      %v788 = vmul.f32 %v708, %v787
      %v789 = vrcp.pop %v746
      %v790 = vmul.f32 %v710, %v789
      %v791 = vrcp.pop %v749
      %v792 = vmul.f32 %v712, %v791
      %v793 = vrcp.pop %v752
      %v794 = vmul.f32 %v714, %v793
      %v795 = vrcp.pop %v755
      %v796 = vmul.f32 %v716, %v795
      %v797 = vrcp.pop %v758
      %v798 = vmul.f32 %v718, %v797
      %v799 = vrcp.pop %v761
      %v800 = vmul.f32 %v720, %v799
      %v801 = vrcp.pop %v764
      %v802 = vmul.f32 %v722, %v801
      %v803 = vrcp.pop %v767
      %v804 = vmul.f32 %v724, %v803
      %v805 = vrcp.pop %v770
      %v806 = vmul.f32 %v726, %v805
      %v807 = vrcp.pop %v773
      %v808 = vmul.f32 %v728, %v807
      %v809 = vrcp.pop %v776
      %v810 = vmul.f32 %v730, %v809
      %v811 = vrcp.pop %v779
      %v812 = vmul.f32 %v732, %v811
      %v813 = vrcp.pop %v782
      %v814 = vmul.f32 %v734, %v813
      %815 = vst.msk [vmem:[%s226] sm:$0xff] %vm638, %v784
      %816 = vst.msk [vmem:[%s226 + $0x8] sm:$0xff] %vm638, %v786
      %817 = vst.msk [vmem:[%s226 + $0x10] sm:$0xff] %vm638, %v788
      %818 = vst.msk [vmem:[%s226 + $0x18] sm:$0xff] %vm638, %v790
      %819 = vst.msk [vmem:[%s226 + $0x20] sm:$0xff] %vm638, %v792
      %820 = vst.msk [vmem:[%s226 + $0x28] sm:$0xff] %vm638, %v794
      %821 = vst.msk [vmem:[%s226 + $0x30] sm:$0xff] %vm638, %v796
      %822 = vst.msk [vmem:[%s226 + $0x38] sm:$0xff] %vm638, %v798
      %823 = vst.msk [vmem:[%s226 + $0x40] sm:$0xff] %vm638, %v800
      %824 = vst.msk [vmem:[%s226 + $0x48] sm:$0xff] %vm638, %v802
      %825 = vst.msk [vmem:[%s226 + $0x50] sm:$0xff] %vm638, %v804
      %826 = vst.msk [vmem:[%s226 + $0x58] sm:$0xff] %vm638, %v806
      %827 = vst.msk [vmem:[%s226 + $0x60] sm:$0xff] %vm638, %v808
      %828 = vst.msk [vmem:[%s226 + $0x68] sm:$0xff] %vm638, %v810
      %829 = vst.msk [vmem:[%s226 + $0x70] sm:$0xff] %vm638, %v812
      %830 = vst.msk [vmem:[%s226 + $0x78] sm:$0xff] %vm638, %v814
      %s831 = smul.u32 16, %s16
      %p832 = scmp.lt.s32.totalorder %s831, 31
      %s833 = scalar_select %p832, %s831, 31
      %s834 = smul.addr %s833, 8
      %s835 = scalar_lea.vmem %s5, %s834
      // Predicated region
      $region41: #{tpu_custom_call.1} parent=39 // pred_check
        %p836 = pneg %p144
      $region42: #{tpu_custom_call.1} parent=39 // pred_check_branch
        %838 = sbr.rel (%p836) target = $region44
      $region43: #{tpu_custom_call.1} parent=39 // pred_region
        %s839 = smul.u32 16, %s16
      $region44: #{tpu_custom_call.1} parent=39 // pred_fallthru
        _
    $region40: #{tpu_custom_call.1} parent=5 // pred_fallthru
      _
    %p840 = scmp.le.s32.totalorder 2, %s11
    // Predicated region
    $region45: #{tpu_custom_call.1} parent=5 // pred_check
      %p841 = pneg %p840
    $region46: #{tpu_custom_call.1} parent=5 // pred_check_branch
      %843 = sbr.rel (%p841) target = $region48
    $region47: #{tpu_custom_call.1} parent=5 // pred_region
      %s844 = ssub.s32 %s11, 2
      // Predicated region
      $region49: #{tpu_custom_call.1} parent=47 // pred_check
        %p845 = pneg %p150
      $region50: #{tpu_custom_call.1} parent=47 // pred_check_branch
        %847 = sbr.rel (%p845) target = $region52
      $region51: #{tpu_custom_call.1} parent=47 // pred_region
        %s848 = smul.u32 16, %s17
        %p849 = scmp.lt.s32.totalorder %s848, 31
        %s850 = scalar_select %p849, %s848, 31
        %s851 = smul.addr %s850, 8
        %s852 = scalar_lea.vmem %s5, %s851
      $region52: #{tpu_custom_call.1} parent=47 // pred_fallthru
        _
    $region48: #{tpu_custom_call.1} parent=5 // pred_fallthru
      _
  $region6: #{tpu_custom_call.1} parent=0 // loop_footer
    %s15 = sadd.s32 1, %s11
  $region7: #{tpu_custom_call.1} parent=0 // loop_footer_branch
    %10 = sbr.rel target = $region3
  $region8: #{tpu_custom_call.1} parent=0 // loop_exit
    _

</llo_original>
